<compile_context>
chip_gen: v5e
topology: v5e:2x2
jax: 0.10.0
libtpu: 0.0.40
codegen_flags: <defaults>
</compile_context>

<pallas_src>
import functools

import jax
import jax.numpy as jnp
from jax.experimental import pallas as pl
from jax.experimental.pallas import tpu as pltpu


def _tv_kernel(x_ref, out_ref, *, W, scale_h, scale_w):
    # x_ref block: (tile_n, H*W) -- tile_n whole spatial planes, flattened so
    # the minor dim is lane-dense even for small W.
    # Upcast first: no-op for f32, matches the f32 reference numerics exactly,
    # and avoids the bf16 unpack/pack round-trip on v5e's f32-only VPU.
    x = x_ref[...].astype(jnp.float32)
    HW = x.shape[1]

    # Vertical (H) neighbours sit exactly W apart in the flattened plane; the
    # slice [0, HW - W) covers precisely rows 0..H-2, so no mask is needed.
    dh = x[:, W:] - x[:, : HW - W]

    # Horizontal (W) neighbours are adjacent; positions k with k % W == W - 1
    # pair across a row boundary and must be masked out.
    dw = x[:, 1:] - x[:, : HW - 1]
    col = jax.lax.broadcasted_iota(jnp.int32, dw.shape, dimension=1) % W
    dw = jnp.where(col != W - 1, dw, 0.0)

    # Scales fold in weight * 2 / (count * batch), so partials add linearly.
    partial = scale_h * jnp.sum(dh * dh) + scale_w * jnp.sum(dw * dw)

    # Private lane-dense (1, 8, 128) output block per grid step; the wrapper
    # reads [i, 0, 0] and does the tiny final (pairwise, f32) reduction.
    out_ref[...] = jnp.full(out_ref.shape, partial, dtype=out_ref.dtype)


def tv_loss(x, tv_loss_weight: float = 1.0):
    """Pallas TPU implementation of TVLoss.forward for NCHW input x."""
    B, C, H, W = x.shape
    N = B * C
    HW = H * W

    count_h = C * (H - 1) * W
    count_w = C * H * (W - 1)
    # Degenerate H == 1 or W == 1: PyTorch computes 0/0 -> nan, and the total
    # is nan.  Early-return instead of running the kernel with zero-size
    # slices.  Intentional; do not "fix".
    if count_h == 0 or count_w == 0:
        return jnp.float32(float("nan"))

    scale_h = tv_loss_weight * 2.0 / (count_h * B)
    scale_w = tv_loss_weight * 2.0 / (count_w * B)

    # Flatten (B, C, H, W) -> (N, H*W): free reshape, lane-dense minor axis
    # (the only layout that avoids 16->128 lane padding when W < 128).
    x2 = x.reshape(N, HW)

    # Size tile_n from the *padded* VMEM footprint of one flattened plane.
    itemsize = jnp.dtype(x.dtype).itemsize
    padded_row_bytes = pl.cdiv(HW, 128) * 128 * itemsize
    block_budget = 2 * 1024 * 1024  # ~85% of HBM roofline on v5e/v6e
    tile_n = max(1, min(N, block_budget // padded_row_bytes))
    # Keep at least 2 blocks when possible so the "parallel" grid axis can
    # shard across the two TensorCores on v7x.
    tile_n = min(tile_n, max(1, pl.cdiv(N, 2)))
    # Sublane alignment: the block's second-minor dim must be a multiple of 8
    # or equal the full array extent.
    if tile_n < N:
        tile_n = min(N, max(8, (tile_n // 8) * 8))

    # Zero-pad N up to a multiple of tile_n instead of shrinking tile_n for
    # awkward N (zero planes contribute exactly 0 to both sums).
    n_pad = (-N) % tile_n
    if n_pad:
        x2 = jnp.pad(x2, ((0, n_pad), (0, 0)))
    n_total = N + n_pad
    grid = n_total // tile_n

    kernel = functools.partial(_tv_kernel, W=W, scale_h=scale_h, scale_w=scale_w)

    flops = 6 * N * HW  # 2 diffs + 2 squares + ~2 adds per element
    bytes_accessed = n_total * HW * itemsize + grid * 8 * 128 * 4

    partials = pl.pallas_call(
        kernel,
        out_shape=jax.ShapeDtypeStruct((grid, 8, 128), jnp.float32),
        grid_spec=pltpu.PrefetchScalarGridSpec(
            num_scalar_prefetch=0,
            grid=(grid,),
            in_specs=[
                # Last block dim equals the full flattened-plane extent, so the
                # 128-lane divisibility constraint never applies to it; the
                # second-minor dim is sublane-aligned (or the full extent).
                pl.BlockSpec((tile_n, HW), lambda i: (i, 0)),
            ],
            out_specs=pl.BlockSpec((1, 8, 128), lambda i: (i, 0, 0)),
        ),
        compiler_params=pltpu.CompilerParams(
            # Per-block partial outputs -> no cross-step accumulator -> the
            # grid axis is safely parallel (shards across TCs on v7x).
            dimension_semantics=("parallel",),
            vmem_limit_bytes=32 * 1024 * 1024,
        ),
        cost_estimate=pl.CostEstimate(
            flops=flops, transcendentals=0, bytes_accessed=bytes_accessed
        ),
    )(x2)

    # Tiny final reduction of per-block partials (pairwise sum in f32).
    return jnp.sum(partials[:, 0, 0])


def tv_loss_ref(x, tv_loss_weight: float = 1.0):
    """Pure-JAX reference mirroring the PyTorch module."""
    x = x.astype(jnp.float32)
    B, C, H, W = x.shape
    count_h = C * (H - 1) * W
    count_w = C * H * (W - 1)
    h_tv = jnp.sum((x[:, :, 1:, :] - x[:, :, : H - 1, :]) ** 2)
    w_tv = jnp.sum((x[:, :, :, 1:] - x[:, :, :, : W - 1]) ** 2)
    return tv_loss_weight * 2.0 * (h_tv / count_h + w_tv / count_w) / B


if __name__ == "__main__":
    key = jax.random.PRNGKey(0)
    x = jax.random.normal(key, (2, 4, 16, 16), dtype=jnp.float32)

    out = tv_loss(x, tv_loss_weight=1.0)
    out = jax.block_until_ready(out)

    ref = tv_loss_ref(x, tv_loss_weight=1.0)
    assert jnp.allclose(out, ref, rtol=1e-5, atol=1e-5), (out, ref)
    print("KERNEL_OK")
</pallas_src>

<mosaic_0001>
module attributes {stable_mosaic.version = 11 : i64} {
  func.func @_tv_kernel(%arg0: i32, %arg1: memref<8x256xf32, #tpu.memory_space<vmem>>, %arg2: memref<1x8x128xf32, #tpu.memory_space<vmem>>) attributes {dimension_semantics = [#tpu.dimension_semantics<parallel>], iteration_bounds = array<i64: 1>, scalar_prefetch = 0 : i64, scratch_operands = 0 : i64, tpu.core_type = #tpu.core_type<tc>, window_params = [{transform_indices = @transform_0, window_bounds = array<i64: 8, 256>}, {transform_indices = @transform_1, window_bounds = array<i64: 1, 8, 128>}]} {
    %c0 = arith.constant 0 : index
    %c0_0 = arith.constant 0 : index
    %0 = vector.load %arg1[%c0, %c0_0] : memref<8x256xf32, #tpu.memory_space<vmem>>, vector<8x256xf32>
    %1 = vector.extract_strided_slice %0 {offsets = [0, 16], sizes = [8, 240], strides = [1, 1]} : vector<8x256xf32> to vector<8x240xf32>
    %2 = vector.extract_strided_slice %0 {offsets = [0, 0], sizes = [8, 240], strides = [1, 1]} : vector<8x256xf32> to vector<8x240xf32>
    %3 = arith.subf %1, %2 : vector<8x240xf32>
    %4 = vector.extract_strided_slice %0 {offsets = [0, 1], sizes = [8, 255], strides = [1, 1]} : vector<8x256xf32> to vector<8x255xf32>
    %5 = vector.extract_strided_slice %0 {offsets = [0, 0], sizes = [8, 255], strides = [1, 1]} : vector<8x256xf32> to vector<8x255xf32>
    %6 = arith.subf %4, %5 : vector<8x255xf32>
    %7 = tpu.iota {dimensions = array<i32: 1>} : vector<8x255xi32>
    %c16_i32 = arith.constant 16 : i32
    %c0_i32 = arith.constant 0 : i32
    %8 = arith.cmpi eq, %c16_i32, %c0_i32 : i32
    %c1_i32 = arith.constant 1 : i32
    %9 = arith.select %8, %c1_i32, %c16_i32 : i32
    %10 = vector.broadcast %9 : i32 to vector<8x255xi32>
    %11 = arith.remsi %7, %10 : vector<8x255xi32>
    %c0_i32_1 = arith.constant 0 : i32
    %12 = vector.broadcast %c0_i32_1 : i32 to vector<8x255xi32>
    %13 = arith.cmpi ne, %11, %12 : vector<8x255xi32>
    %c0_i32_2 = arith.constant 0 : i32
    %14 = vector.broadcast %c0_i32_2 : i32 to vector<8x255xi32>
    %15 = arith.cmpi slt, %11, %14 : vector<8x255xi32>
    %c0_i32_3 = arith.constant 0 : i32
    %16 = arith.cmpi slt, %9, %c0_i32_3 : i32
    %17 = vector.broadcast %16 : i1 to vector<8x255xi1>
    %18 = vector.broadcast %17 : vector<8x255xi1> to vector<8x255xi1>
    %19 = arith.xori %15, %18 : vector<8x255xi1>
    %20 = arith.andi %19, %13 : vector<8x255xi1>
    %21 = vector.broadcast %9 : i32 to vector<8x255xi32>
    %22 = arith.addi %11, %21 : vector<8x255xi32>
    %23 = arith.select %20, %22, %11 : vector<8x255xi1>, vector<8x255xi32>
    %c15_i32 = arith.constant 15 : i32
    %24 = vector.broadcast %c15_i32 : i32 to vector<8x255xi32>
    %25 = arith.cmpi ne, %23, %24 : vector<8x255xi32>
    %cst = arith.constant 0.000000e+00 : f32
    %26 = vector.broadcast %cst : f32 to vector<8x255xf32>
    %27 = arith.select %25, %6, %26 : vector<8x255xi1>, vector<8x255xf32>
    %28 = arith.mulf %3, %3 : vector<8x240xf32>
    %29 = vector.shape_cast %28 : vector<8x240xf32> to vector<1x8x240xf32>
    %cst_4 = arith.constant dense<0.000000e+00> : vector<1xf32>
    %30 = vector.multi_reduction <add>, %29, %cst_4 [1, 2] : vector<1x8x240xf32> to vector<1xf32>
    %31 = vector.shape_cast %30 : vector<1xf32> to vector<1x1x1xf32>
    %32 = vector.extract %31[0, 0, 0] : f32 from vector<1x1x1xf32>
    %cst_5 = arith.constant 0.00104166672 : f32
    %33 = arith.mulf %cst_5, %32 : f32
    %34 = arith.mulf %27, %27 : vector<8x255xf32>
    %35 = vector.shape_cast %34 : vector<8x255xf32> to vector<1x8x255xf32>
    %cst_6 = arith.constant dense<0.000000e+00> : vector<1xf32>
    %36 = vector.multi_reduction <add>, %35, %cst_6 [1, 2] : vector<1x8x255xf32> to vector<1xf32>
    %37 = vector.shape_cast %36 : vector<1xf32> to vector<1x1x1xf32>
    %38 = vector.extract %37[0, 0, 0] : f32 from vector<1x1x1xf32>
    %cst_7 = arith.constant 0.00104166672 : f32
    %39 = arith.mulf %cst_7, %38 : f32
    %40 = arith.addf %33, %39 : f32
    %41 = vector.broadcast %40 : f32 to vector<1x8x128xf32>
    %c0_8 = arith.constant 0 : index
    %c0_9 = arith.constant 0 : index
    %c0_10 = arith.constant 0 : index
    %42 = vector.load %arg2[%c0_8, %c0_9, %c0_10] : memref<1x8x128xf32, #tpu.memory_space<vmem>>, vector<1x8x128xf32>
    tpu.vector_store %arg2[%c0_8, %c0_9, %c0_10], %41 {strides = array<i32>} : memref<1x8x128xf32, #tpu.memory_space<vmem>>, vector<1x8x128xf32>,
    return
  }
  func.func @transform_0(%arg0: i32) -> (i32, i32) {
    %c0_i32 = arith.constant 0 : i32
    %c0_i32_0 = arith.constant 0 : i32
    return %arg0, %c0_i32 : i32, i32
  }
  func.func @transform_1(%arg0: i32) -> (i32, i32, i32) {
    %c0_i32 = arith.constant 0 : i32
    %c0_i32_0 = arith.constant 0 : i32
    %c0_i32_1 = arith.constant 0 : i32
    return %arg0, %c0_i32, %c0_i32_0 : i32, i32, i32
  }
}

</mosaic_0001>

<llo_original>
// kernel: tpu_custom_call.1
$region0: #{tpu_custom_call.1}
  #allocation0 [shape = 'u32[]', space=smem, size = 0x4, offset = 0x4, fixed_abs, tag = 'smem constant byte address 0x4 - core index']
  #allocation1 [shape = 'u32[72,128]{1,0:T(1,128)}', space=vmem, size = 0x9000, scoped, tag = 'internal scratch']
  %s0 = inlined_call_operand.hbm [shape: f32[8,256], index: 0, kind: input, shape index: {}]
  %s1 = inlined_call_operand.hbm [shape: f32[1,8,128], index: 1, kind: output, shape index: {}]
  %s2 = sld [smem:[#allocation0]]
  $region18: #{tpu_custom_call.1} parent=0
    _
  %s4 = ssub.s32 1, %s2
  %s5 = scalar_select 0, %s4, %s2
  $region1: #{tpu_custom_call.1} parent=0
    #allocation2 [shape = 'u8[8192]{0}', space=vmem, size = 0x2000, scoped, tag = 'input window, operand 0, single buffered']
    #allocation3 [shape = 's32[1]{0}', space=sflag, size = 0x4, scoped, tag = 'scoped memory for tpu_custom_call.1']
    #allocation4 [shape = 's32[1]{0}', space=sflag, size = 0x4, scoped, tag = 'scoped memory for tpu_custom_call.1']
    #allocation5 [shape = 'u8[4096]{0}', space=vmem, size = 0x1000, scoped, tag = 'output window, operand 0, single buffered']
    %6 = vsyncpa [#allocation3], 0
    %7 = vsyncpa [#allocation4], 0
    // Predicated region
    $region2: #{tpu_custom_call.1} parent=1 // pred_check
      _
    $region3: #{tpu_custom_call.1} parent=1 // pred_check_branch
      %9 = sbr.rel (0) target = $region5
    $region4: #{tpu_custom_call.1} parent=1 // pred_region
      %11 = vsyncadd [#allocation3], 0
      %s13 = sshll.u32 %s0, 4
      %s14 = int_to_ptr.hbm [resolvable:$true] %s13
      %s15 = sshll.u32 [#allocation2], 4
      %s16 = int_to_ptr.vmem [resolvable:$true] %s15
      %18 = dma.hbm_to_vmem [thread:$0]  %s14, 256, %s16, [#allocation3]
    $region5: #{tpu_custom_call.1} parent=1 // pred_fallthru
      _
    // Predicated region
    $region6: #{tpu_custom_call.1} parent=1 // pred_check
      _
    $region7: #{tpu_custom_call.1} parent=1 // pred_check_branch
      %20 = sbr.rel (0) target = $region9
    $region8: #{tpu_custom_call.1} parent=1 // pred_region
      %22 = dma.done [#allocation3], 256
    $region9: #{tpu_custom_call.1} parent=1 // pred_fallthru
      _
    %v23 = vld [vmem:[#allocation2] sm:$0xff]
    %v24 = vld [vmem:[#allocation2 + $0x8] sm:$0xff]
    %27 = vrot.lane.b32.xlu0 %v23, 16
    %v28 = vpop.permute.xlu0 %27
    %29 = vrot.lane.b32.xlu0 %v24, 16
    %v30 = vpop.permute.xlu0 %29
    %vm31 = vcmask 130048
    %v32 = vsel %vm31, %v28, %v30
    %v35 = vsub.f32 %v23, %v28
    %v36 = vsub.f32 %v24, %v32
    %37 = vrot.lane.b32.xlu0 %v23, 1
    %v38 = vpop.permute.xlu0 %37
    %39 = vrot.lane.b32.xlu0 %v24, 1
    %v40 = vpop.permute.xlu0 %39
    %vm41 = vcmask 7168
    %v42 = vsel %vm41, %v38, %v40
    %v45 = vsub.f32 %v23, %v38
    %v46 = vsub.f32 %v24, %v42
    %v47 = vlaneseq
    %v48 = vand.u32 %v47, 127
    %v49 = vadd.s32 %v48, 128
    %vm50 = vcmp.lt.s32.totalorder %v48, 0
    %v51 = vsub.s32 0, %v48
    %v52 = vsel %vm50, %v51, %v48
    %v53 = vshrl.u32 %v52, 4
    %v54 = vand.u32 %v52, 15
    %v55 = vsub.s32 0, %v54
    %v56 = vsel %vm50, %v55, %v54
    %vm57 = vcmp.lt.s32.totalorder %v49, 0
    %v58 = vsub.s32 0, %v49
    %v59 = vsel %vm57, %v58, %v49
    %v60 = vshrl.u32 %v59, 4
    %v61 = vand.u32 %v59, 15
    %v62 = vsub.s32 0, %v61
    %v63 = vsel %vm57, %v62, %v61
    %vm64 = vcmp.ne.s32.totalorder %v56, 0
    %vm65 = vcmp.ne.s32.totalorder %v63, 0
    %vm66 = vcmp.lt.s32.totalorder %v56, 0
    %vm67 = vcmp.lt.s32.totalorder %v63, 0
    %vm68 = vmand %vm66, %vm64
    %vm69 = vmand %vm67, %vm65
    %v70 = vadd.s32 %v56, 16
    %v71 = vadd.s32 %v63, 16
    %v72 = vsel %vm68, %v70, %v56
    %v73 = vsel %vm69, %v71, %v63
    %vm74 = vcmp.ne.s32.totalorder %v72, 15
    %vm75 = vcmp.ne.s32.totalorder %v73, 15
    %78 = vrot.lane.b32.xlu0 %v45, 127
    %v79 = vpop.permute.xlu0 %78
    %80 = vrot.lane.b32.xlu0 %v46, 127
    %v81 = vpop.permute.xlu0 %80
    %vm82 = vcmask 1039360
    %v83 = vsel %vm82, %v79, %v81
    %v86 = vsel %vm74, %v83, 0.0
    %v87 = vsel %vm75, %v81, 0.0
    %v88 = vmul.f32 %v35, %v35
    %v89 = vmul.f32 %v36, %v36
    %92 = vrot.lane.b32.xlu0 %v88, 112
    %v93 = vpop.permute.xlu0 %92
    %94 = vrot.lane.b32.xlu0 %v89, 112
    %v95 = vpop.permute.xlu0 %94
    %vm96 = vcmask 916480
    %v97 = vsel %vm96, %v93, %v95
    %v100 = vsel %vm96, %v95, 0.0
    %v101 = vadd.f32 %v97, %v100
    %102 = vadd.xlane.f32.xlu0 %v101
    %v103 = vpop.xlane.xlu0 %102
    %v104 = vrot.slane %v103, 4
    %v105 = vadd.f32 %v103, %v104
    %v106 = vrot.slane %v105, 2
    %v107 = vadd.f32 %v105, %v106
    %v108 = vrot.slane %v107, 1
    %v109 = vadd.f32 %v107, %v108
    %s110 = vtos %v109
    %s111 = smul.f32 %s110, 0.0010416667
    %v112 = vmul.f32 %v86, %v86
    %v113 = vmul.f32 %v87, %v87
    %v114 = vsel %vm82, %v113, 0.0
    %v115 = vadd.f32 %v112, %v114
    %116 = vadd.xlane.f32.xlu0 %v115
    %v117 = vpop.xlane.xlu0 %116
    %v118 = vrot.slane %v117, 4
    %v119 = vadd.f32 %v117, %v118
    %v120 = vrot.slane %v119, 2
    %v121 = vadd.f32 %v119, %v120
    %v122 = vrot.slane %v121, 1
    %v123 = vadd.f32 %v121, %v122
    %s124 = vtos %v123
    %s125 = smul.f32 %s124, 0.0010416667
    %s126 = sadd.f32 %s111, %s125
    %v127 = vstv %s126
    %128 = vst [vmem:[#allocation5] sm:$0xff] %v127
    // Predicated region
    $region10: #{tpu_custom_call.1} parent=1 // pred_check
      _
    $region11: #{tpu_custom_call.1} parent=1 // pred_check_branch
      %130 = sbr.rel (0) target = $region13
    $region12: #{tpu_custom_call.1} parent=1 // pred_region
      %132 = vsyncadd [#allocation4], 0
      %s134 = sshll.u32 [#allocation5], 4
      %s135 = int_to_ptr.vmem [resolvable:$true] %s134
      %s136 = sshll.u32 %s1, 4
      %s137 = int_to_ptr.hbm [resolvable:$true] %s136
      %139 = dma.vmem_to_hbm [thread:$0]  %s135, 128, %s137, [#allocation4]
    $region13: #{tpu_custom_call.1} parent=1 // pred_fallthru
      _
    // Predicated region
    $region14: #{tpu_custom_call.1} parent=1 // pred_check
      _
    $region15: #{tpu_custom_call.1} parent=1 // pred_check_branch
      %141 = sbr.rel (0) target = $region17
    $region16: #{tpu_custom_call.1} parent=1 // pred_region
      %143 = dma.done [#allocation4], 128
    $region17: #{tpu_custom_call.1} parent=1 // pred_fallthru
      _
    %144 = vsyncpa [#allocation3], 1
    %145 = vsyncpa [#allocation4], 1

</llo_original>
